<compile_context>
chip_gen: v7x
topology: tpu7x:2x2x1
jax: 0.10.0
libtpu: 0.0.40
codegen_flags: <defaults>
</compile_context>

<pallas_src>
import functools

import jax
import jax.numpy as jnp
from jax.experimental import pallas as pl
from jax.experimental.pallas import tpu as pltpu


def _round_up(x, m):
    return (x + m - 1) // m * m


def _label_smooth_ce_kernel(x_ref, t_ref, o_ref, *, epsilon, total_rows):
    i = pl.program_id(0)

    x = x_ref[...].astype(jnp.float32)           # (TB, K) block, f32 compute
    tb, k = x.shape

    # Labels are resident (untiled) in VMEM; slice this tile's rows.
    start = pl.multiple_of(i * tb, tb)
    labels = t_ref[pl.ds(start, tb), :]          # (TB, 1) int32

    # Closed-form per-row loss with ONE fused weighted reduction:
    #   loss_b = lse_b - sum_k w_{b,k} * shifted_{b,k}
    #   w_{b,k} = (1 - eps) * [k == y_b] + eps / K
    m = jnp.max(x, axis=1, keepdims=True)        # (TB, 1)
    shifted = x - m                              # (TB, K)
    lse = jnp.log(jnp.sum(jnp.exp(shifted), axis=1, keepdims=True))      # (TB, 1)

    class_ids = jax.lax.broadcasted_iota(jnp.int32, (tb, k), 1)
    w = jnp.where(class_ids == labels,
                  jnp.float32(1.0 - epsilon + epsilon / k),
                  jnp.float32(epsilon / k))      # (TB, K)
    per_row = lse - jnp.sum(w * shifted, axis=1, keepdims=True)          # (TB, 1)

    # Mask rows past the true batch (wrapper zero-pads, so lse is finite there;
    # only this narrow (TB,1) mask is needed).
    row_ids = i * tb + jax.lax.broadcasted_iota(jnp.int32, (tb, 1), 0)
    per_row = jnp.where(row_ids < total_rows, per_row, 0.0)

    o_ref[...] = jnp.sum(per_row).reshape(1, 1, 1)


def _choose_block_rows(batch, k, in_itemsize):
    try:
        vmem_cap = int(pltpu.get_tpu_info().vmem_capacity_bytes)
    except Exception:  # pragma: no cover - conservative fallback
        vmem_cap = 64 << 20
    # Per-(TB,K) f32 temporary target: ~4 MiB on v7x (64 MiB VMEM),
    # ~12 MiB on v5e/v6e (128 MiB VMEM).
    temp_target = (4 << 20) if vmem_cap <= (64 << 20) else (12 << 20)
    # Row alignment matches sublane packing of the input dtype.
    align = 8 if in_itemsize >= 4 else (16 if in_itemsize == 2 else 32)
    rows = temp_target // max(1, k * 4)
    rows = max(align, min(2048, rows))
    rows = (rows // align) * align
    rows = min(rows, _round_up(batch, align))
    return int(rows), vmem_cap


def cross_entropy_label_smooth(inputs, targets, *, num_classes, epsilon=0.1,
                               block_rows=None):
    """inputs: (B, K) float logits (f32 or bf16); targets: (B,) int labels.

    Returns a scalar f32 loss identical to CrossEntropyLabelSmooth.forward.
    """
    B, K = inputs.shape
    assert K == num_classes
    in_itemsize = jnp.dtype(inputs.dtype).itemsize

    tb, _ = _choose_block_rows(B, K, in_itemsize)
    if block_rows is not None:
        tb = max(8, (int(block_rows) // 8) * 8)
    b_pad = _round_up(B, tb)
    n_blocks = b_pad // tb

    x = inputs
    t = targets.astype(jnp.int32).reshape(B, 1)
    if b_pad != B:
        x = jnp.pad(x, ((0, b_pad - B), (0, 0)))
        t = jnp.pad(t, ((0, b_pad - B), (0, 0)))

    kernel = functools.partial(_label_smooth_ce_kernel,
                               epsilon=float(epsilon), total_rows=B)

    # Scoped VMEM must always cover the chosen tile plan:
    # double-buffered input block + ~6 full-width f32 temporaries + resident
    # labels + 1 MiB headroom for Mosaic internal scratch.
    f32_block = tb * K * 4
    in_block = tb * K * in_itemsize
    need = 2 * in_block + 6 * f32_block + b_pad * 4 + (1 << 20)
    vmem_limit = int(max(16 << 20, need))

    cost = pl.CostEstimate(
        flops=int(5 * B * K),
        transcendentals=int(B * K),
        bytes_accessed=int(B * K * in_itemsize + B * 4 + n_blocks * 4),
    )

    partials = pl.pallas_call(
        kernel,
        out_shape=jax.ShapeDtypeStruct((n_blocks, 1, 1), jnp.float32),
        grid_spec=pltpu.PrefetchScalarGridSpec(
            num_scalar_prefetch=0,
            grid=(n_blocks,),
            in_specs=[
                pl.BlockSpec((tb, K), lambda i: (i, 0)),
                # Whole label vector resident in VMEM (single DMA, reused).
                pl.BlockSpec((b_pad, 1), lambda i: (0, 0)),
            ],
            out_specs=pl.BlockSpec((1, 1, 1), lambda i: (i, 0, 0)),
        ),
        compiler_params=pltpu.CompilerParams(
            dimension_semantics=("parallel",),   # batch axis splits across TCs
            vmem_limit_bytes=vmem_limit,
        ),
        cost_estimate=cost,
    )(x, t)

    return jnp.sum(partials) / jnp.float32(B)


def _reference(inputs, targets, num_classes, epsilon=0.1):
    log_probs = jax.nn.log_softmax(inputs.astype(jnp.float32), axis=1)
    one_hot = jax.nn.one_hot(targets, num_classes, dtype=jnp.float32)
    t = (1.0 - epsilon) * one_hot + epsilon / num_classes
    return (-t * log_probs).mean(0).sum()


if __name__ == "__main__":
    eps = 0.1
    key = jax.random.PRNGKey(0)
    k1, k2, k3, k4 = jax.random.split(key, 4)

    # Case 1: f32 logits, batch NOT a multiple of 8 -> exercises pad/mask path.
    B, K = 10, 128
    logits = jax.random.normal(k1, (B, K), dtype=jnp.float32) * 3.0
    labels = jax.random.randint(k2, (B,), 0, K, dtype=jnp.int32)
    loss = cross_entropy_label_smooth(logits, labels, num_classes=K, epsilon=eps)
    loss = jax.block_until_ready(loss)
    ref = _reference(logits, labels, K, eps)
    assert jnp.allclose(loss, ref, atol=1e-5, rtol=1e-5), (loss, ref)

    # Case 2: bf16 logits + small block_rows -> multi-block parallel grid with
    # per-block partial outputs.
    B2, K2 = 24, 256
    logits2 = (jax.random.normal(k3, (B2, K2), dtype=jnp.float32) * 2.0
               ).astype(jnp.bfloat16)
    labels2 = jax.random.randint(k4, (B2,), 0, K2, dtype=jnp.int32)
    loss2 = cross_entropy_label_smooth(logits2, labels2, num_classes=K2,
                                       epsilon=eps, block_rows=8)
    loss2 = jax.block_until_ready(loss2)
    ref2 = _reference(logits2, labels2, K2, eps)
    assert jnp.allclose(loss2, ref2, atol=2e-4, rtol=2e-4), (loss2, ref2)

    print("KERNEL_OK")
</pallas_src>

<mosaic_0001>
module attributes {stable_mosaic.version = 11 : i64} {
  func.func @_label_smooth_ce_kernel(%arg0: i32, %arg1: memref<16x128xf32, #tpu.memory_space<vmem>>, %arg2: memref<16x1xi32, #tpu.memory_space<vmem>>, %arg3: memref<1x1x1xf32, #tpu.memory_space<vmem>>) attributes {dimension_semantics = [#tpu.dimension_semantics<parallel>], iteration_bounds = array<i64: 1>, scalar_prefetch = 0 : i64, scratch_operands = 0 : i64, tpu.core_type = #tpu.core_type<tc>, window_params = [{transform_indices = @transform_0, window_bounds = array<i64: 16, 128>}, {pipeline_mode = #tpu.pipeline_mode<synchronous>, transform_indices = @transform_1, window_bounds = array<i64: 16, 1>}, {transform_indices = @transform_2, window_bounds = array<i64: 1, 1, 1>}]} {
    %c0 = arith.constant 0 : index
    %c0_0 = arith.constant 0 : index
    %0 = vector.load %arg1[%c0, %c0_0] : memref<16x128xf32, #tpu.memory_space<vmem>>, vector<16x128xf32>
    %c16_i32 = arith.constant 16 : i32
    %1 = arith.muli %arg0, %c16_i32 : i32
    %2 = tpu.assume_multiple %1, 16 : i32
    %3 = arith.index_cast %2 : i32 to index
    %c0_1 = arith.constant 0 : index
    %4 = vector.load %arg2[%3, %c0_1] : memref<16x1xi32, #tpu.memory_space<vmem>>, vector<16x1xi32>
    %cst = arith.constant dense<0xFF800000> : vector<16xf32>
    %5 = vector.multi_reduction <maximumf>, %0, %cst [1] : vector<16x128xf32> to vector<16xf32>
    %6 = vector.shape_cast %5 : vector<16xf32> to vector<16x1xf32>
    %7 = vector.broadcast %6 : vector<16x1xf32> to vector<16x128xf32>
    %8 = arith.subf %0, %7 : vector<16x128xf32>
    %9 = math.exp %8 : vector<16x128xf32>
    %cst_2 = arith.constant dense<0.000000e+00> : vector<16xf32>
    %10 = vector.multi_reduction <add>, %9, %cst_2 [1] : vector<16x128xf32> to vector<16xf32>
    %11 = vector.shape_cast %10 : vector<16xf32> to vector<16x1xf32>
    %12 = math.log %11 : vector<16x1xf32>
    %13 = tpu.iota {dimensions = array<i32: 1>} : vector<16x128xi32>
    %14 = vector.broadcast %4 : vector<16x1xi32> to vector<16x128xi32>
    %15 = arith.cmpi eq, %13, %14 : vector<16x128xi32>
    %cst_3 = arith.constant 0.900781273 : f32
    %cst_4 = arith.constant 7.812500e-04 : f32
    %16 = vector.broadcast %cst_3 : f32 to vector<16x128xf32>
    %17 = vector.broadcast %cst_4 : f32 to vector<16x128xf32>
    %18 = arith.select %15, %16, %17 : vector<16x128xi1>, vector<16x128xf32>
    %19 = arith.mulf %18, %8 : vector<16x128xf32>
    %cst_5 = arith.constant dense<0.000000e+00> : vector<16xf32>
    %20 = vector.multi_reduction <add>, %19, %cst_5 [1] : vector<16x128xf32> to vector<16xf32>
    %21 = vector.shape_cast %20 : vector<16xf32> to vector<16x1xf32>
    %22 = arith.subf %12, %21 : vector<16x1xf32>
    %c16_i32_6 = arith.constant 16 : i32
    %23 = arith.muli %arg0, %c16_i32_6 : i32
    %24 = tpu.iota {dimensions = array<i32: 0>} : vector<16x1xi32>
    %25 = vector.broadcast %23 : i32 to vector<16x1xi32>
    %26 = arith.addi %25, %24 : vector<16x1xi32>
    %c10_i32 = arith.constant 10 : i32
    %27 = vector.broadcast %c10_i32 : i32 to vector<16x1xi32>
    %28 = arith.cmpi slt, %26, %27 : vector<16x1xi32>
    %cst_7 = arith.constant 0.000000e+00 : f32
    %29 = vector.broadcast %cst_7 : f32 to vector<16x1xf32>
    %30 = arith.select %28, %22, %29 : vector<16x1xi1>, vector<16x1xf32>
    %31 = vector.shape_cast %30 : vector<16x1xf32> to vector<1x16x1xf32>
    %cst_8 = arith.constant dense<0.000000e+00> : vector<1xf32>
    %32 = vector.multi_reduction <add>, %31, %cst_8 [1, 2] : vector<1x16x1xf32> to vector<1xf32>
    %33 = vector.shape_cast %32 : vector<1xf32> to vector<1x1x1xf32>
    %34 = vector.extract %33[0, 0, 0] : f32 from vector<1x1x1xf32>
    %35 = vector.broadcast %34 : f32 to vector<1x1x1xf32>
    %c0_9 = arith.constant 0 : index
    %c0_10 = arith.constant 0 : index
    %c0_11 = arith.constant 0 : index
    %36 = vector.load %arg3[%c0_9, %c0_10, %c0_11] : memref<1x1x1xf32, #tpu.memory_space<vmem>>, vector<1x1x1xf32>
    tpu.vector_store %arg3[%c0_9, %c0_10, %c0_11], %35 {strides = array<i32>} : memref<1x1x1xf32, #tpu.memory_space<vmem>>, vector<1x1x1xf32>,
    return
  }
  func.func @transform_0(%arg0: i32) -> (i32, i32) {
    %c0_i32 = arith.constant 0 : i32
    %c0_i32_0 = arith.constant 0 : i32
    return %arg0, %c0_i32 : i32, i32
  }
  func.func @transform_1(%arg0: i32) -> (i32, i32) {
    %c0_i32 = arith.constant 0 : i32
    %c0_i32_0 = arith.constant 0 : i32
    %c0_i32_1 = arith.constant 0 : i32
    return %c0_i32, %c0_i32_0 : i32, i32
  }
  func.func @transform_2(%arg0: i32) -> (i32, i32, i32) {
    %c0_i32 = arith.constant 0 : i32
    %c0_i32_0 = arith.constant 0 : i32
    %c0_i32_1 = arith.constant 0 : i32
    return %arg0, %c0_i32, %c0_i32_0 : i32, i32, i32
  }
}

</mosaic_0001>

<llo_original>
// kernel: tpu_custom_call.1
$region0: #{tpu_custom_call.1}
  #allocation0 [shape = 'u32[]', space=smem, size = 0x4, offset = 0x4, fixed_abs, tag = 'smem constant byte address 0x4 - core index']
  #allocation1 [shape = 'u32[144,128]{1,0:T(1,128)}', space=vmem, size = 0x12000, scoped, tag = 'internal scratch']
  %s0 = inlined_call_operand.vmem [shape: f32[16,128], index: 0, kind: input, shape index: {}]
  %s1 = inlined_call_operand.vmem [shape: s32[16,1], index: 1, kind: input, shape index: {}]
  %s2 = inlined_call_operand.hbm [shape: f32[1,1,1], index: 2, kind: output, shape index: {}]
  %s3 = sld [smem:[#allocation0]]
  $region18: #{tpu_custom_call.1} parent=0
    _
  %s5 = ssub.s32 1, %s3
  %s6 = scalar_select 0, %s5, %s3
  $region1: #{tpu_custom_call.1} parent=0
    #allocation2 [shape = 'u8[512]{0}', space=vmem, size = 0x400, scoped, tag = 'output window, operand 0, single buffered']
    #allocation3 [shape = 's32[1]{0}', space=sflag, size = 0x4, scoped, tag = 'scoped memory for tpu_custom_call.1']
    %7 = vsyncpa [#allocation3], 0
    // Predicated region
    $region2: #{tpu_custom_call.1} parent=1 // pred_check
      _
    $region3: #{tpu_custom_call.1} parent=1 // pred_check_branch
      %9 = sbr.rel (0) target = $region5
    $region4: #{tpu_custom_call.1} parent=1 // pred_region
      _
    $region5: #{tpu_custom_call.1} parent=1 // pred_fallthru
      _
    // Predicated region
    $region6: #{tpu_custom_call.1} parent=1 // pred_check
      _
    $region7: #{tpu_custom_call.1} parent=1 // pred_check_branch
      %11 = sbr.rel (0) target = $region9
    $region8: #{tpu_custom_call.1} parent=1 // pred_region
      _
    $region9: #{tpu_custom_call.1} parent=1 // pred_fallthru
      _
    %v12 = vld [vmem:[%s0] sm:$0xff]
    %v13 = vld [vmem:[%s0 + $0x8] sm:$0xff]
    %s14 = smul.u32 0, 16
    %s15 = scalar_lea.vmem %s1, %s14
    %v16 = vld [vmem:[%s15] sm:$0xff]
    %v17 = vld [vmem:[%s15 + $0x8] sm:$0xff]
    %18 = vmax.xlane.f32.xlu0 %v12
    %v19 = vpop.xlane.xlu0 %18
    %20 = vmax.xlane.f32.xlu0 %v13
    %v21 = vpop.xlane.xlu0 %20
    %v22 = vsub.f32 %v12, %v19
    %v23 = vsub.f32 %v13, %v21
    %v24 = vmul.f32 %v22, 1.442695
    %v25 = vpow.pop %v24
    %v26 = vmul.f32 %v23, 1.442695
    %v27 = vpow.pop %v26
    %28 = vadd.xlane.f32.xlu0 %v25
    %v29 = vpop.xlane.xlu0 %28
    %30 = vadd.xlane.f32.xlu0 %v27
    %v31 = vpop.xlane.xlu0 %30
    %v32 = vlog2.pop %v29
    %v33 = vmul.f32 %v32, 0.6931472
    %v34 = vlog2.pop %v31
    %v35 = vmul.f32 %v34, 0.6931472
    %v36 = vlaneseq
    %v37 = vand.u32 %v36, 127
    %38 = vset.pattern.permute.xlu0 0
    %39 = vperm.xlu0 %38, %v16
    %v40 = vpop.permute.xlu0 %39
    %41 = vset.pattern.permute.xlu0 0
    %42 = vperm.xlu0 %41, %v17
    %v43 = vpop.permute.xlu0 %42
    %vm44 = vcmp.eq.s32.totalorder %v37, %v40
    %vm45 = vcmp.eq.s32.totalorder %v37, %v43
    %v46 = vsel %vm44, 0.9007813, 0.00078125
    %v47 = vsel %vm45, 0.9007813, 0.00078125
    %v48 = vmul.f32 %v46, %v22
    %v49 = vmul.f32 %v47, %v23
    %50 = vadd.xlane.f32.xlu0 %v48
    %v51 = vpop.xlane.xlu0 %50
    %52 = vadd.xlane.f32.xlu0 %v49
    %v53 = vpop.xlane.xlu0 %52
    %v54 = vsub.f32 %v33, %v51
    %v55 = vsub.f32 %v35, %v53
    %v56 = vlaneseq
    %v57 = vshrl.u32 %v56, 7
    %v58 = vadd.s32 %v57, 8
    %v59 = vstv %s14
    %v60 = vadd.s32 %v59, %v57
    %v61 = vadd.s32 %v59, %v58
    %vm62 = vcmp.lt.s32.totalorder %v60, 10
    %vm63 = vcmp.lt.s32.totalorder %v61, 10
    %v64 = vsel %vm62, %v54, 0.0
    %v65 = vsel %vm63, %v55, 0.0
    %vm66 = vcmask 7168
    %v67 = vsel %vm66, %v64, 0.0
    %v68 = vsel %vm66, %v65, 0.0
    %v69 = vadd.f32 %v67, %v68
    %70 = vadd.xlane.f32.xlu0 %v69
    %v71 = vpop.xlane.xlu0 %70
    %v72 = vrot.slane %v71, 4
    %v73 = vadd.f32 %v71, %v72
    %v74 = vrot.slane %v73, 2
    %v75 = vadd.f32 %v73, %v74
    %v76 = vrot.slane %v75, 1
    %v77 = vadd.f32 %v75, %v76
    %s78 = vtos %v77
    %v79 = vstv %s78
    %vm80 = vcmask 0
    %81 = vst.msk [vmem:[#allocation2] sm:$0x1] %vm80, %v79
    // Predicated region
    $region10: #{tpu_custom_call.1} parent=1 // pred_check
      _
    $region11: #{tpu_custom_call.1} parent=1 // pred_check_branch
      %83 = sbr.rel (0) target = $region13
    $region12: #{tpu_custom_call.1} parent=1 // pred_region
      %s85 = ssub.s32 16, 16
      %86 = vsyncadd [#allocation3], %s85
      %s88 = sshll.u32 [#allocation2], 4
      %s89 = int_to_ptr.vmem [resolvable:$true] %s88
      %91 = dma.vmem_to_hbm [thread:$0]  %s89, 16, %s2, [#allocation3]
    $region13: #{tpu_custom_call.1} parent=1 // pred_fallthru
      _
    // Predicated region
    $region14: #{tpu_custom_call.1} parent=1 // pred_check
      _
    $region15: #{tpu_custom_call.1} parent=1 // pred_check_branch
      %93 = sbr.rel (0) target = $region17
    $region16: #{tpu_custom_call.1} parent=1 // pred_region
      %94 = dma.done [#allocation3], 16
    $region17: #{tpu_custom_call.1} parent=1 // pred_fallthru
      _
    %95 = vsyncpa [#allocation3], 1

</llo_original>
